<compile_context>
chip_gen: v7x
topology: tpu7x:2x2x1
jax: 0.10.0
libtpu: 0.0.40
codegen_flags: <defaults>
</compile_context>

<pallas_src>
import jax
import jax.numpy as jnp
from jax.experimental import pallas as pl
from jax.experimental.pallas import tpu as pltpu


# ----------------------------- kernel 1: tanh --------------------------------
def _tanh_kernel(x_ref, o_ref):
    o_ref[...] = jnp.tanh(x_ref[...])


def tanh_pallas(x, *, max_tile=1024):
    n, d = x.shape
    tile = n
    for cand in (1024, 512, 256, 128, 64, 32, 16, 8):
        if cand <= max_tile and cand <= n and n % cand == 0:
            tile = cand
            break
    return pl.pallas_call(
        _tanh_kernel,
        out_shape=jax.ShapeDtypeStruct(x.shape, x.dtype),
        grid=(n // tile,),
        in_specs=[pl.BlockSpec((tile, d), lambda i: (i, 0))],
        out_specs=pl.BlockSpec((tile, d), lambda i: (i, 0)),
        compiler_params=pltpu.CompilerParams(dimension_semantics=("parallel",)),
    )(x)


# --- kernel 2: fused edge math + online segment softmax + segment sum + tanh ---
def _agg_kernel(ebs_ref, nbl_ref, rows_ref, tri_rel_ref, neighs_ref, ak_ref,
                out_ref, m_sc, l_sc, acc_sc):
    i = pl.program_id(0)                     # node tile
    j = pl.program_id(1)                     # edge block within this node tile's window
    tn = acc_sc.shape[0]
    te = rows_ref.shape[1]

    @pl.when(j == 0)
    def _init():
        m_sc[...] = jnp.full_like(m_sc, -jnp.inf)
        l_sc[...] = jnp.zeros_like(l_sc)
        acc_sc[...] = jnp.zeros_like(acc_sc)

    @pl.when(j < nbl_ref[i])                 # skip padded / duplicated (clamped) blocks
    def _accumulate():
        # ---- fused per-edge math on the streamed (te, D) block (all f32, VPU) ----
        tri_rel = tri_rel_ref[...]                                   # (te, D)
        sq = jnp.sum(tri_rel * tri_rel, axis=-1, keepdims=True)
        inv_norm = jax.lax.rsqrt(jnp.maximum(sq, 1e-24))             # F.normalize eps=1e-12
        tri_n = tri_rel * inv_norm
        neighs = neighs_ref[...]                                     # (te, D)
        proj = jnp.sum(neighs * tri_n, axis=-1, keepdims=True)
        refl = neighs - 2.0 * proj * tri_n                           # Householder reflection
        att = jnp.sum(tri_n * ak_ref[...], axis=-1)[None, :]         # (1, te) logits

        # ---- online segment softmax + segment sum over destination rows ----
        rows = rows_ref[...]                                         # (1, te) dst node ids
        node_ids = jax.lax.broadcasted_iota(jnp.int32, (tn, te), 0) + i * tn
        onehot = node_ids == rows                                    # (tn, te)
        onehot_f = onehot.astype(jnp.float32)
        block_max = jnp.max(jnp.where(onehot, att, -jnp.inf), axis=-1, keepdims=True)
        m_prev = m_sc[...]
        m_new = jnp.maximum(m_prev, block_max)
        m_safe = jnp.maximum(m_new, -1e30)   # finite stand-in for rows with no edges yet
        alpha = jnp.exp(m_prev - m_safe)     # (tn, 1) rescale of previous partial stats
        # per-edge running max gather -> exp over only (1, te) elements (EUP saving)
        m_e = jnp.sum(onehot_f * m_safe, axis=0, keepdims=True)      # (1, te)
        # clamp keeps lanes whose row is outside this node tile finite (they are masked
        # by onehot below); for matched lanes att - m_e <= 0 so the clamp is a no-op.
        p_edge = jnp.exp(jnp.minimum(att - m_e, 0.0))                # (1, te)
        p = onehot_f * p_edge                                        # (tn, te), f32
        l_sc[...] = alpha * l_sc[...] + jnp.sum(p, axis=-1, keepdims=True)
        # bf16 MXU operands, f32 accumulation (stats stay f32)
        acc_sc[...] = alpha * acc_sc[...] + jnp.dot(
            p.astype(jnp.bfloat16), refl.astype(jnp.bfloat16),
            preferred_element_type=jnp.float32)
        m_sc[...] = m_new

    @pl.when(j == pl.num_programs(1) - 1)
    def _finalize():
        l = l_sc[...]
        denom = jnp.where(l == 0.0, 1.0, l)  # nodes with no edges -> 0 (scatter_sum default)
        out_ref[...] = jnp.tanh(acc_sc[...] * pl.reciprocal(denom, approx=True))


def agg_pallas(adj_row2d, tri_rel, neighs, ak_row, eb_start, nblocks, *,
               node_size, node_tile, edge_tile, max_nblocks):
    T, D = neighs.shape
    num_node_tiles = node_size // node_tile
    num_eblocks = T // edge_tile
    last_eblock = num_eblocks - 1

    def edge_map_cols(i, j, ebs, nbl):
        return (0, jnp.minimum(ebs[i] + j, last_eblock))

    def edge_map_rows(i, j, ebs, nbl):
        return (jnp.minimum(ebs[i] + j, last_eblock), 0)

    def out_map(i, j, ebs, nbl):
        return (i, 0)

    def ak_map(i, j, ebs, nbl):
        return (0, 0)

    return pl.pallas_call(
        _agg_kernel,
        out_shape=jax.ShapeDtypeStruct((node_size, D), jnp.float32),
        grid_spec=pltpu.PrefetchScalarGridSpec(
            num_scalar_prefetch=2,
            grid=(num_node_tiles, max_nblocks),
            in_specs=[
                pl.BlockSpec((1, edge_tile), edge_map_cols),   # adj[0] rows (dst), int32
                pl.BlockSpec((edge_tile, D), edge_map_rows),   # tri_rel (relation mix)
                pl.BlockSpec((edge_tile, D), edge_map_rows),   # gathered neighbor features
                pl.BlockSpec((1, D), ak_map),                  # attention kernel (row)
            ],
            out_specs=pl.BlockSpec((node_tile, D), out_map),
            scratch_shapes=[
                pltpu.VMEM((node_tile, 1), jnp.float32),       # running row max
                pltpu.VMEM((node_tile, 1), jnp.float32),       # running softmax denom
                pltpu.VMEM((node_tile, D), jnp.float32),       # running numerator
            ]),
        compiler_params=pltpu.CompilerParams(
            dimension_semantics=("parallel", "arbitrary")),
    )(eb_start, nblocks, adj_row2d, tri_rel, neighs, ak_row)


# ------------------------ CSR block schedule (glue) ---------------------------
def _agg_schedule(adj_row, node_size, node_tile, edge_tile):
    """Edges are sorted by destination row. For each tile of `node_tile` nodes, find
    the window of `edge_tile`-sized edge blocks that can contain its edges."""
    boundaries = jnp.arange(0, node_size + 1, node_tile)
    edge_start = jnp.searchsorted(adj_row, boundaries, side="left")
    start, end = edge_start[:-1], edge_start[1:]
    eb_start = (start // edge_tile).astype(jnp.int32)
    eb_end = jnp.where(end > start, (end - 1) // edge_tile + 1, start // edge_tile)
    nblocks = (eb_end - start // edge_tile).astype(jnp.int32)
    # Static grid extent (host-side int; schedule metadata computed once per graph).
    max_nblocks = max(int(jnp.max(nblocks)), 1)
    return eb_start, nblocks, max_nblocks


# ------------------------------- forward glue ---------------------------------
def graph_attention_forward(features, rel_emb, adj, r_index, r_val, attn_kernels,
                            node_size, rel_size, triple_size, node_dim, depth=1,
                            edge_tile=512, node_tile=256):
    node_tile = min(node_tile, node_size)
    assert triple_size % edge_tile == 0 and edge_tile % 128 == 0
    assert node_size % node_tile == 0 and node_tile % 8 == 0

    adj_row = adj[0].astype(jnp.int32)
    adj_col = adj[1]
    adj_row2d = adj_row.reshape(1, triple_size)

    # CSR block schedule (adj is constant across layers); scalar-prefetched into SMEM.
    eb_start, nblocks, max_nblocks = _agg_schedule(adj_row, node_size, node_tile, edge_tile)

    features = tanh_pallas(features)
    outputs = [features]
    for l in range(depth):
        ak_row = attn_kernels[l].reshape(1, node_dim)
        # torch.sparse.mm(COO(r_index, r_val, [T, rel_size]), rel_emb) as an O(nnz x D)
        # gather + scatter-add (XLA glue): no dense [T, rel_size] matrix.
        tri_rel = jnp.zeros((triple_size, node_dim), jnp.float32).at[r_index[0]].add(
            r_val[:, None] * rel_emb[r_index[1]])
        neighs = features[adj_col]                      # neighbor gather (XLA glue)
        # Fused kernel: edge math + segment softmax + segment sum + tanh.
        features = agg_pallas(adj_row2d, tri_rel, neighs, ak_row, eb_start, nblocks,
                              node_size=node_size, node_tile=node_tile,
                              edge_tile=edge_tile, max_nblocks=max_nblocks)
        outputs.append(features)
    return jnp.concatenate(outputs, axis=-1)


# ------------------------------ pure-JAX reference ----------------------------
def _reference(features, rel_emb, adj, r_index, r_val, attn_kernels,
               node_size, triple_size, node_dim, depth):
    feats = jnp.tanh(features)
    outs = [feats]
    for l in range(depth):
        ak = attn_kernels[l]
        tri_rel = jnp.zeros((triple_size, node_dim), jnp.float32).at[r_index[0]].add(
            r_val[:, None] * rel_emb[r_index[1]])
        neighs = feats[adj[1]]
        norm = jnp.sqrt(jnp.sum(tri_rel * tri_rel, axis=1, keepdims=True))
        tri_rel = tri_rel / jnp.maximum(norm, 1e-12)
        neighs = neighs - 2.0 * jnp.sum(neighs * tri_rel, axis=1, keepdims=True) * tri_rel
        att = (tri_rel @ ak)[:, 0]
        row = adj[0]
        row_max = jax.ops.segment_max(att, row, num_segments=node_size)
        e = jnp.exp(att - row_max[row])
        denom = jax.ops.segment_sum(e, row, num_segments=node_size)
        w = e / denom[row]
        feats = jnp.tanh(jax.ops.segment_sum(neighs * w[:, None], row,
                                             num_segments=node_size))
        outs.append(feats)
    return jnp.concatenate(outs, axis=-1)


# ----------------------------------- main --------------------------------------
if __name__ == "__main__":
    node_size, rel_size, triple_size, node_dim, depth = 256, 32, 2048, 128, 1
    edges_per_node = triple_size // node_size  # 8

    key = jax.random.PRNGKey(0)
    k1, k2, k3, k4, k5 = jax.random.split(key, 5)

    features = jax.random.normal(k1, (node_size, node_dim), jnp.float32)
    rel_emb = jax.random.normal(k2, (rel_size, node_dim), jnp.float32)

    # adj: `edges_per_node` unique edges per node, sorted by (row, col) so that the
    # torch coalesce order equals the input order (assumption carried over).
    rows = jnp.repeat(jnp.arange(node_size), edges_per_node)
    offsets = jnp.arange(1, 2 * edges_per_node + 1, 2)       # distinct offsets mod node_size
    cols = jnp.sort((rows.reshape(node_size, edges_per_node) + offsets[None, :]) % node_size,
                    axis=1).reshape(-1)
    adj = jnp.stack([rows, cols]).astype(jnp.int32)          # [2, triple_size]

    # r_index / r_val: one relation id per triple (general COO also supported)
    r_index = jnp.stack([jnp.arange(triple_size),
                         jax.random.randint(k3, (triple_size,), 0, rel_size)]).astype(jnp.int32)
    r_val = jax.random.uniform(k4, (triple_size,), jnp.float32, 0.1, 1.0)

    # attn_kernels: xavier_uniform for shape (node_dim, 1)
    bound = (6.0 / (node_dim + 1)) ** 0.5
    attn_kernels = [jax.random.uniform(k5, (node_dim, 1), jnp.float32, -bound, bound)]
    # NOTE: w1, w2, w3 parameters exist in __init__ but are unused in forward; omitted.

    out = graph_attention_forward(features, rel_emb, adj, r_index, r_val, attn_kernels,
                                  node_size, rel_size, triple_size, node_dim, depth)
    out = jax.block_until_ready(out)
    assert out.shape == (node_size, node_dim * (depth + 1)), out.shape
    assert bool(jnp.all(jnp.isfinite(out)))

    ref = _reference(features, rel_emb, adj, r_index, r_val, attn_kernels,
                     node_size, triple_size, node_dim, depth)
    # Tolerance reflects bf16 MXU operands (f32 accumulation) in the segment-sum matmul
    # and the approx reciprocal on the softmax denominator; everything else is f32.
    assert bool(jnp.allclose(out, ref, rtol=1e-2, atol=1e-2)), \
        float(jnp.max(jnp.abs(out - ref)))
    print("KERNEL_OK")
</pallas_src>

<mosaic_0001>
module attributes {stable_mosaic.version = 11 : i64} {
  func.func @_tanh_kernel(%arg0: i32, %arg1: memref<256x128xf32, #tpu.memory_space<vmem>>, %arg2: memref<256x128xf32, #tpu.memory_space<vmem>>) attributes {dimension_semantics = [#tpu.dimension_semantics<parallel>], iteration_bounds = array<i64: 1>, scalar_prefetch = 0 : i64, scratch_operands = 0 : i64, tpu.core_type = #tpu.core_type<tc>, window_params = [{transform_indices = @transform_0, window_bounds = array<i64: 256, 128>}, {transform_indices = @transform_1, window_bounds = array<i64: 256, 128>}]} {
    %c0 = arith.constant 0 : index
    %c0_0 = arith.constant 0 : index
    %0 = vector.load %arg1[%c0, %c0_0] : memref<256x128xf32, #tpu.memory_space<vmem>>, vector<256x128xf32>
    %1 = math.tanh %0 : vector<256x128xf32>
    %c0_1 = arith.constant 0 : index
    %c0_2 = arith.constant 0 : index
    %2 = vector.load %arg2[%c0_1, %c0_2] : memref<256x128xf32, #tpu.memory_space<vmem>>, vector<256x128xf32>
    tpu.vector_store %arg2[%c0_1, %c0_2], %1 {strides = array<i32>} : memref<256x128xf32, #tpu.memory_space<vmem>>, vector<256x128xf32>,
    return
  }
  func.func @transform_0(%arg0: i32) -> (i32, i32) {
    %c0_i32 = arith.constant 0 : i32
    %c0_i32_0 = arith.constant 0 : i32
    return %arg0, %c0_i32 : i32, i32
  }
  func.func @transform_1(%arg0: i32) -> (i32, i32) {
    %c0_i32 = arith.constant 0 : i32
    %c0_i32_0 = arith.constant 0 : i32
    return %arg0, %c0_i32 : i32, i32
  }
}

</mosaic_0001>

<llo_original>
// kernel: tpu_custom_call.1
$region0: #{tpu_custom_call.1}
  #allocation0 [shape = 'u32[]', space=smem, size = 0x4, offset = 0x4, fixed_abs, tag = 'smem constant byte address 0x4 - core index']
  #allocation1 [shape = 'u32[144,128]{1,0:T(1,128)}', space=vmem, size = 0x12000, scoped, tag = 'internal scratch']
  %s0 = inlined_call_operand.hbm [shape: f32[256,128], index: 0, kind: input, shape index: {}]
  %s1 = inlined_call_operand.hbm [shape: f32[256,128], index: 1, kind: output, shape index: {}]
  %s2 = sld [smem:[#allocation0]]
  $region18: #{tpu_custom_call.1} parent=0
    _
  %s4 = ssub.s32 1, %s2
  %s5 = scalar_select 0, %s4, %s2
  $region1: #{tpu_custom_call.1} parent=0
    #allocation2 [shape = 'u8[131072]{0}', space=vmem, size = 0x20000, scoped, tag = 'input window, operand 0, single buffered']
    #allocation3 [shape = 's32[1]{0}', space=sflag, size = 0x4, scoped, tag = 'scoped memory for tpu_custom_call.1']
    #allocation4 [shape = 's32[1]{0}', space=sflag, size = 0x4, scoped, tag = 'scoped memory for tpu_custom_call.1']
    #allocation5 [shape = 'u8[131072]{0}', space=vmem, size = 0x20000, scoped, tag = 'output window, operand 0, single buffered']
    %6 = vsyncpa [#allocation3], 0
    %7 = vsyncpa [#allocation4], 0
    // Predicated region
    $region2: #{tpu_custom_call.1} parent=1 // pred_check
      _
    $region3: #{tpu_custom_call.1} parent=1 // pred_check_branch
      %9 = sbr.rel (0) target = $region5
    $region4: #{tpu_custom_call.1} parent=1 // pred_region
      %s11 = ssub.s32 4096, 4096
      %12 = vsyncadd [#allocation3], %s11
      %s13 = sshll.u32 [#allocation2], 4
      %s14 = int_to_ptr.vmem [resolvable:$true] %s13
      %19 = dma.hbm_to_vmem [thread:$0]  %s0, 4096, %s14, [#allocation3], 128, 128, 8
    $region5: #{tpu_custom_call.1} parent=1 // pred_fallthru
      _
    // Predicated region
    $region6: #{tpu_custom_call.1} parent=1 // pred_check
      _
    $region7: #{tpu_custom_call.1} parent=1 // pred_check_branch
      %21 = sbr.rel (0) target = $region9
    $region8: #{tpu_custom_call.1} parent=1 // pred_region
      %22 = dma.done [#allocation3], 4096
    $region9: #{tpu_custom_call.1} parent=1 // pred_fallthru
      _
    %v23 = vld [vmem:[#allocation2] sm:$0xff]
    %v24 = vld [vmem:[#allocation2 + $0x8] sm:$0xff]
    %v25 = vld [vmem:[#allocation2 + $0x10] sm:$0xff]
    %v26 = vld [vmem:[#allocation2 + $0x18] sm:$0xff]
    %v27 = vld [vmem:[#allocation2 + $0x20] sm:$0xff]
    %v28 = vld [vmem:[#allocation2 + $0x28] sm:$0xff]
    %v29 = vld [vmem:[#allocation2 + $0x30] sm:$0xff]
    %v30 = vld [vmem:[#allocation2 + $0x38] sm:$0xff]
    %v31 = vld [vmem:[#allocation2 + $0x40] sm:$0xff]
    %v32 = vld [vmem:[#allocation2 + $0x48] sm:$0xff]
    %v33 = vld [vmem:[#allocation2 + $0x50] sm:$0xff]
    %v34 = vld [vmem:[#allocation2 + $0x58] sm:$0xff]
    %v35 = vld [vmem:[#allocation2 + $0x60] sm:$0xff]
    %v36 = vld [vmem:[#allocation2 + $0x68] sm:$0xff]
    %v37 = vld [vmem:[#allocation2 + $0x70] sm:$0xff]
    %v38 = vld [vmem:[#allocation2 + $0x78] sm:$0xff]
    %v39 = vld [vmem:[#allocation2 + $0x80] sm:$0xff]
    %v40 = vld [vmem:[#allocation2 + $0x88] sm:$0xff]
    %v41 = vld [vmem:[#allocation2 + $0x90] sm:$0xff]
    %v42 = vld [vmem:[#allocation2 + $0x98] sm:$0xff]
    %v43 = vld [vmem:[#allocation2 + $0xa0] sm:$0xff]
    %v44 = vld [vmem:[#allocation2 + $0xa8] sm:$0xff]
    %v45 = vld [vmem:[#allocation2 + $0xb0] sm:$0xff]
    %v46 = vld [vmem:[#allocation2 + $0xb8] sm:$0xff]
    %v47 = vld [vmem:[#allocation2 + $0xc0] sm:$0xff]
    %v48 = vld [vmem:[#allocation2 + $0xc8] sm:$0xff]
    %v49 = vld [vmem:[#allocation2 + $0xd0] sm:$0xff]
    %v50 = vld [vmem:[#allocation2 + $0xd8] sm:$0xff]
    %v51 = vld [vmem:[#allocation2 + $0xe0] sm:$0xff]
    %v52 = vld [vmem:[#allocation2 + $0xe8] sm:$0xff]
    %v53 = vld [vmem:[#allocation2 + $0xf0] sm:$0xff]
    %v54 = vld [vmem:[#allocation2 + $0xf8] sm:$0xff]
    %v55 = vtanh.pop %v23
    %v56 = vtanh.pop %v24
    %v57 = vtanh.pop %v25
    %v58 = vtanh.pop %v26
    %v59 = vtanh.pop %v27
    %v60 = vtanh.pop %v28
    %v61 = vtanh.pop %v29
    %v62 = vtanh.pop %v30
    %v63 = vtanh.pop %v31
    %v64 = vtanh.pop %v32
    %v65 = vtanh.pop %v33
    %v66 = vtanh.pop %v34
    %v67 = vtanh.pop %v35
    %v68 = vtanh.pop %v36
    %v69 = vtanh.pop %v37
    %v70 = vtanh.pop %v38
    %v71 = vtanh.pop %v39
    %v72 = vtanh.pop %v40
    %v73 = vtanh.pop %v41
    %v74 = vtanh.pop %v42
    %v75 = vtanh.pop %v43
    %v76 = vtanh.pop %v44
    %v77 = vtanh.pop %v45
    %v78 = vtanh.pop %v46
    %v79 = vtanh.pop %v47
    %v80 = vtanh.pop %v48
    %v81 = vtanh.pop %v49
    %v82 = vtanh.pop %v50
    %v83 = vtanh.pop %v51
    %v84 = vtanh.pop %v52
    %v85 = vtanh.pop %v53
    %v86 = vtanh.pop %v54
    %87 = vst [vmem:[#allocation5] sm:$0xff] %v55
    %88 = vst [vmem:[#allocation5 + $0x8] sm:$0xff] %v56
    %89 = vst [vmem:[#allocation5 + $0x10] sm:$0xff] %v57
    %90 = vst [vmem:[#allocation5 + $0x18] sm:$0xff] %v58
    %91 = vst [vmem:[#allocation5 + $0x20] sm:$0xff] %v59
    %92 = vst [vmem:[#allocation5 + $0x28] sm:$0xff] %v60
    %93 = vst [vmem:[#allocation5 + $0x30] sm:$0xff] %v61
    %94 = vst [vmem:[#allocation5 + $0x38] sm:$0xff] %v62
    %95 = vst [vmem:[#allocation5 + $0x40] sm:$0xff] %v63
    %96 = vst [vmem:[#allocation5 + $0x48] sm:$0xff] %v64
    %97 = vst [vmem:[#allocation5 + $0x50] sm:$0xff] %v65
    %98 = vst [vmem:[#allocation5 + $0x58] sm:$0xff] %v66
    %99 = vst [vmem:[#allocation5 + $0x60] sm:$0xff] %v67
    %100 = vst [vmem:[#allocation5 + $0x68] sm:$0xff] %v68
    %101 = vst [vmem:[#allocation5 + $0x70] sm:$0xff] %v69
    %102 = vst [vmem:[#allocation5 + $0x78] sm:$0xff] %v70
    %103 = vst [vmem:[#allocation5 + $0x80] sm:$0xff] %v71
    %104 = vst [vmem:[#allocation5 + $0x88] sm:$0xff] %v72
    %105 = vst [vmem:[#allocation5 + $0x90] sm:$0xff] %v73
    %106 = vst [vmem:[#allocation5 + $0x98] sm:$0xff] %v74
    %107 = vst [vmem:[#allocation5 + $0xa0] sm:$0xff] %v75
    %108 = vst [vmem:[#allocation5 + $0xa8] sm:$0xff] %v76
    %109 = vst [vmem:[#allocation5 + $0xb0] sm:$0xff] %v77
    %110 = vst [vmem:[#allocation5 + $0xb8] sm:$0xff] %v78
    %111 = vst [vmem:[#allocation5 + $0xc0] sm:$0xff] %v79
    %112 = vst [vmem:[#allocation5 + $0xc8] sm:$0xff] %v80
    %113 = vst [vmem:[#allocation5 + $0xd0] sm:$0xff] %v81
    %114 = vst [vmem:[#allocation5 + $0xd8] sm:$0xff] %v82
    %115 = vst [vmem:[#allocation5 + $0xe0] sm:$0xff] %v83
    %116 = vst [vmem:[#allocation5 + $0xe8] sm:$0xff] %v84
    %117 = vst [vmem:[#allocation5 + $0xf0] sm:$0xff] %v85
    %118 = vst [vmem:[#allocation5 + $0xf8] sm:$0xff] %v86
    // Predicated region
    $region10: #{tpu_custom_call.1} parent=1 // pred_check
      _
    $region11: #{tpu_custom_call.1} parent=1 // pred_check_branch
      %120 = sbr.rel (0) target = $region13
    $region12: #{tpu_custom_call.1} parent=1 // pred_region
      %s122 = ssub.s32 4096, 4096
      %123 = vsyncadd [#allocation4], %s122
      %s124 = sshll.u32 [#allocation5], 4
      %s125 = int_to_ptr.vmem [resolvable:$true] %s124
      %130 = dma.vmem_to_hbm [thread:$0]  %s125, 4096, %s1, [#allocation4], 128, 128, 8
    $region13: #{tpu_custom_call.1} parent=1 // pred_fallthru
      _
    // Predicated region
    $region14: #{tpu_custom_call.1} parent=1 // pred_check
      _
    $region15: #{tpu_custom_call.1} parent=1 // pred_check_branch
      %132 = sbr.rel (0) target = $region17
    $region16: #{tpu_custom_call.1} parent=1 // pred_region
      %133 = dma.done [#allocation4], 4096
    $region17: #{tpu_custom_call.1} parent=1 // pred_fallthru
      _
    %134 = vsyncpa [#allocation3], 1
    %135 = vsyncpa [#allocation4], 1

</llo_original>
